<compile_context>
chip_gen: v7x
topology: tpu7x:2x2x1
jax: 0.10.0
libtpu: 0.0.40
codegen_flags: <defaults>
</compile_context>

<pallas_src>
import functools

import jax
import jax.numpy as jnp
from jax.experimental import pallas as pl
from jax.experimental.pallas import tpu as pltpu


def _round_up(n, m):
    return ((n + m - 1) // m) * m


def _logreg_kernel(n_layers,
                   x_ref, w1_ref, b1_ref, wm_ref, bm_ref, wl_ref, bl_ref,
                   o_ref):
    # x tile (bf16) -> first Linear (BN already folded into w1/b1) + ReLU.
    h = jnp.dot(x_ref[...], w1_ref[...],
                preferred_element_type=jnp.float32) + b1_ref[...]
    h = jnp.maximum(h, 0.0)

    # Hidden layers: shared weights, applied (n_layers - 1) times.
    # Hoist the weight / bias reads (and their broadcasts) out of the unrolled loop.
    if n_layers > 1:
        wm = wm_ref[...]
        bm = bm_ref[...]
        for _ in range(n_layers - 1):
            h = jnp.dot(h.astype(wm.dtype), wm,
                        preferred_element_type=jnp.float32) + bm
            h = jnp.maximum(h, 0.0)

    # Last Linear (output padded to 128 lanes) + Sigmoid.
    wl = wl_ref[...]
    logits = jnp.dot(h.astype(wl.dtype), wl,
                     preferred_element_type=jnp.float32) + bl_ref[...]
    o_ref[...] = jax.nn.sigmoid(logits).astype(o_ref.dtype)


def logistic_regression_forward(x, params, *, n_layers=1, block_m=256):
    """x: [N, D] float32. params: dict of arrays (see init_params)."""
    N, D = x.shape
    H = params["w_first"].shape[1]
    out_dim = params["w_last"].shape[1]
    eps = 1e-5

    # ---- Fold BatchNorm (eval mode) into the first Linear -------------------
    # y = ((x - mean) * rsqrt(var+eps) * gamma + beta) @ W1 + b1
    #   = x @ (s[:,None] * W1) + (t @ W1 + b1),   s = gamma*rsqrt(var+eps), t = beta - mean*s
    s = params["bn_gamma"] * jax.lax.rsqrt(params["bn_var"] + eps)      # [1, D]
    t = params["bn_beta"] - params["bn_mean"] * s                       # [1, D]
    w1 = params["w_first"] * s.reshape(D, 1)                            # [D, H]
    b1 = t @ params["w_first"] + params["b_first"]                      # [1, H]

    # ---- Lane-dense output: pad output_dim up to 128 ------------------------
    out_pad = _round_up(max(out_dim, 1), 128)
    wl = jnp.zeros((H, out_pad), jnp.float32).at[:, :out_dim].set(params["w_last"])
    bl = jnp.zeros((1, out_pad), jnp.float32).at[:, :out_dim].set(params["b_last"])

    # ---- Batch tiling --------------------------------------------------------
    tm = min(block_m, _round_up(N, 8))
    n_pad = _round_up(N, tm)
    x_p = x if n_pad == N else jnp.zeros((n_pad, D), x.dtype).at[:N, :].set(x)

    # ---- bf16 for MXU inputs; biases / activations stay f32 -----------------
    x_bf = x_p.astype(jnp.bfloat16)
    w1_bf = w1.astype(jnp.bfloat16)
    wm_bf = params["w_mid"].astype(jnp.bfloat16)
    wl_bf = wl.astype(jnp.bfloat16)
    bm = params["b_mid"]

    grid = (n_pad // tm,)
    kernel = functools.partial(_logreg_kernel, n_layers)

    # Cost estimate (per full call) for XLA scheduling around the kernel.
    flops = 2 * n_pad * (D * H + (n_layers - 1) * H * H + H * out_pad)
    bytes_accessed = (x_bf.size * 2 + w1_bf.size * 2 + wm_bf.size * 2 + wl_bf.size * 2
                      + b1.size * 4 + bm.size * 4 + bl.size * 4
                      + n_pad * out_pad * 4)
    cost = pl.CostEstimate(flops=flops,
                           transcendentals=n_pad * out_pad,
                           bytes_accessed=bytes_accessed)

    const = lambda i: (0, 0)  # weights / biases: same block every grid step (VMEM-resident)
    out_padded = pl.pallas_call(
        kernel,
        out_shape=jax.ShapeDtypeStruct((n_pad, out_pad), jnp.float32),
        grid_spec=pltpu.PrefetchScalarGridSpec(
            num_scalar_prefetch=0,
            grid=grid,
            in_specs=[
                pl.BlockSpec((tm, D), lambda i: (i, 0)),       # x tile
                pl.BlockSpec((D, H), const),                   # w_first (BN-folded)
                pl.BlockSpec((1, H), const),                   # b_first (BN-folded)
                pl.BlockSpec((H, H), const),                   # w_mid
                pl.BlockSpec((1, H), const),                   # b_mid
                pl.BlockSpec((H, out_pad), const),             # w_last (padded)
                pl.BlockSpec((1, out_pad), const),             # b_last (padded)
            ],
            out_specs=pl.BlockSpec((tm, out_pad), lambda i: (i, 0)),
        ),
        compiler_params=pltpu.CompilerParams(
            dimension_semantics=("parallel",),
            vmem_limit_bytes=64 * 1024 * 1024,
        ),
        cost_estimate=cost,
    )(x_bf, w1_bf, b1, wm_bf, bm, wl_bf, bl)

    return out_padded[:N, :out_dim]


def init_params(key, input_dim, output_dim, bottleneck=None):
    intermed = bottleneck if bottleneck else input_dim
    ks = jax.random.split(key, 10)

    def linear(kw, kb, fan_in, fan_out):
        # PyTorch nn.Linear default init: U(-1/sqrt(fan_in), 1/sqrt(fan_in))
        bound = 1.0 / jnp.sqrt(fan_in)
        w = jax.random.uniform(kw, (fan_in, fan_out), jnp.float32, -bound, bound)
        b = jax.random.uniform(kb, (1, fan_out), jnp.float32, -bound, bound)
        return w, b

    w_first, b_first = linear(ks[0], ks[1], input_dim, intermed)
    w_mid, b_mid = linear(ks[2], ks[3], intermed, intermed)
    w_last, b_last = linear(ks[4], ks[5], intermed, output_dim)

    return {
        # BatchNorm1d params / running stats (kept as [1, D] rows for TPU layout)
        "bn_gamma": jnp.ones((1, input_dim), jnp.float32),
        "bn_beta": jnp.zeros((1, input_dim), jnp.float32),
        "bn_mean": 0.1 * jax.random.normal(ks[6], (1, input_dim), jnp.float32),
        "bn_var": 1.0 + 0.1 * jax.random.uniform(ks[7], (1, input_dim), jnp.float32),
        "w_first": w_first, "b_first": b_first,
        "w_mid": w_mid, "b_mid": b_mid,
        "w_last": w_last, "b_last": b_last,
    }


def reference_forward(x, p, n_layers=1):
    eps = 1e-5
    xn = (x - p["bn_mean"]) / jnp.sqrt(p["bn_var"] + eps) * p["bn_gamma"] + p["bn_beta"]
    h = jnp.maximum(xn @ p["w_first"] + p["b_first"], 0.0)
    for _ in range(n_layers - 1):
        h = jnp.maximum(h @ p["w_mid"] + p["b_mid"], 0.0)
    return jax.nn.sigmoid(h @ p["w_last"] + p["b_last"])


if __name__ == "__main__":
    key = jax.random.PRNGKey(0)
    k_x, k_p = jax.random.split(key)

    batch, input_dim, output_dim, n_layers = 8, 32, 4, 2
    x = jax.random.normal(k_x, (batch, input_dim), jnp.float32)
    params = init_params(k_p, input_dim, output_dim)

    out = logistic_regression_forward(x, params, n_layers=n_layers)
    out = jax.block_until_ready(out)

    ref = reference_forward(x, params, n_layers=n_layers)
    assert out.shape == (batch, output_dim)
    # bf16 weights/activations into the MXU (f32 accumulation) -> loosened tolerance.
    assert jnp.allclose(out, ref, atol=2e-2, rtol=2e-2), "mismatch vs JAX reference"

    print("KERNEL_OK")
</pallas_src>

<mosaic_0001>
module attributes {stable_mosaic.version = 11 : i64} {
  func.func @_logreg_kernel(%arg0: i32, %arg1: memref<8x32xbf16, #tpu.memory_space<vmem>>, %arg2: memref<32x32xbf16, #tpu.memory_space<vmem>>, %arg3: memref<1x32xf32, #tpu.memory_space<vmem>>, %arg4: memref<32x32xbf16, #tpu.memory_space<vmem>>, %arg5: memref<1x32xf32, #tpu.memory_space<vmem>>, %arg6: memref<32x128xbf16, #tpu.memory_space<vmem>>, %arg7: memref<1x128xf32, #tpu.memory_space<vmem>>, %arg8: memref<8x128xf32, #tpu.memory_space<vmem>>) attributes {dimension_semantics = [#tpu.dimension_semantics<parallel>], iteration_bounds = array<i64: 1>, scalar_prefetch = 0 : i64, scratch_operands = 0 : i64, tpu.core_type = #tpu.core_type<tc>, window_params = [{transform_indices = @transform_0, window_bounds = array<i64: 8, 32>}, {pipeline_mode = #tpu.pipeline_mode<synchronous>, transform_indices = @transform_1, window_bounds = array<i64: 32, 32>}, {pipeline_mode = #tpu.pipeline_mode<synchronous>, transform_indices = @transform_2, window_bounds = array<i64: 1, 32>}, {pipeline_mode = #tpu.pipeline_mode<synchronous>, transform_indices = @transform_3, window_bounds = array<i64: 32, 32>}, {pipeline_mode = #tpu.pipeline_mode<synchronous>, transform_indices = @transform_4, window_bounds = array<i64: 1, 32>}, {pipeline_mode = #tpu.pipeline_mode<synchronous>, transform_indices = @transform_5, window_bounds = array<i64: 32, 128>}, {pipeline_mode = #tpu.pipeline_mode<synchronous>, transform_indices = @transform_6, window_bounds = array<i64: 1, 128>}, {transform_indices = @transform_7, window_bounds = array<i64: 8, 128>}]} {
    %c0 = arith.constant 0 : index
    %c0_0 = arith.constant 0 : index
    %0 = vector.load %arg1[%c0, %c0_0] : memref<8x32xbf16, #tpu.memory_space<vmem>>, vector<8x32xbf16>
    %c0_1 = arith.constant 0 : index
    %c0_2 = arith.constant 0 : index
    %1 = vector.load %arg2[%c0_1, %c0_2] : memref<32x32xbf16, #tpu.memory_space<vmem>>, vector<32x32xbf16>
    %cst = arith.constant dense<0.000000e+00> : vector<8x32xf32>
    %2 = tpu.matmul %0, %1, %cst {dimension_numbers = #tpu.dot_dimension_numbers<[1], [0], [0], [1], [0, 0, 1, 1], [], []>} : vector<8x32xbf16>, vector<32x32xbf16>, vector<8x32xf32> -> vector<8x32xf32>
    %c0_3 = arith.constant 0 : index
    %c0_4 = arith.constant 0 : index
    %3 = vector.load %arg3[%c0_3, %c0_4] : memref<1x32xf32, #tpu.memory_space<vmem>>, vector<1x32xf32>
    %4 = vector.broadcast %3 : vector<1x32xf32> to vector<8x32xf32>
    %5 = arith.addf %2, %4 : vector<8x32xf32>
    %cst_5 = arith.constant 0.000000e+00 : f32
    %6 = vector.broadcast %cst_5 : f32 to vector<8x32xf32>
    %7 = arith.maximumf %5, %6 : vector<8x32xf32>
    %c0_6 = arith.constant 0 : index
    %c0_7 = arith.constant 0 : index
    %8 = vector.load %arg4[%c0_6, %c0_7] : memref<32x32xbf16, #tpu.memory_space<vmem>>, vector<32x32xbf16>
    %c0_8 = arith.constant 0 : index
    %c0_9 = arith.constant 0 : index
    %9 = vector.load %arg5[%c0_8, %c0_9] : memref<1x32xf32, #tpu.memory_space<vmem>>, vector<1x32xf32>
    %10 = arith.truncf %7 : vector<8x32xf32> to vector<8x32xbf16>
    %cst_10 = arith.constant dense<0.000000e+00> : vector<8x32xf32>
    %11 = tpu.matmul %10, %8, %cst_10 {dimension_numbers = #tpu.dot_dimension_numbers<[1], [0], [0], [1], [0, 0, 1, 1], [], []>} : vector<8x32xbf16>, vector<32x32xbf16>, vector<8x32xf32> -> vector<8x32xf32>
    %12 = vector.broadcast %9 : vector<1x32xf32> to vector<8x32xf32>
    %13 = arith.addf %11, %12 : vector<8x32xf32>
    %cst_11 = arith.constant 0.000000e+00 : f32
    %14 = vector.broadcast %cst_11 : f32 to vector<8x32xf32>
    %15 = arith.maximumf %13, %14 : vector<8x32xf32>
    %c0_12 = arith.constant 0 : index
    %c0_13 = arith.constant 0 : index
    %16 = vector.load %arg6[%c0_12, %c0_13] : memref<32x128xbf16, #tpu.memory_space<vmem>>, vector<32x128xbf16>
    %17 = arith.truncf %15 : vector<8x32xf32> to vector<8x32xbf16>
    %cst_14 = arith.constant dense<0.000000e+00> : vector<8x128xf32>
    %18 = tpu.matmul %17, %16, %cst_14 {dimension_numbers = #tpu.dot_dimension_numbers<[1], [0], [0], [1], [0, 0, 1, 1], [], []>} : vector<8x32xbf16>, vector<32x128xbf16>, vector<8x128xf32> -> vector<8x128xf32>
    %c0_15 = arith.constant 0 : index
    %c0_16 = arith.constant 0 : index
    %19 = vector.load %arg7[%c0_15, %c0_16] : memref<1x128xf32, #tpu.memory_space<vmem>>, vector<1x128xf32>
    %20 = vector.broadcast %19 : vector<1x128xf32> to vector<8x128xf32>
    %21 = arith.addf %18, %20 : vector<8x128xf32>
    %22 = arith.negf %21 : vector<8x128xf32>
    %23 = math.exp %22 : vector<8x128xf32>
    %cst_17 = arith.constant 1.000000e+00 : f32
    %24 = vector.broadcast %cst_17 : f32 to vector<8x128xf32>
    %25 = arith.addf %24, %23 : vector<8x128xf32>
    %26 = arith.divf %24, %25 : vector<8x128xf32>
    %c0_18 = arith.constant 0 : index
    %c0_19 = arith.constant 0 : index
    %27 = vector.load %arg8[%c0_18, %c0_19] : memref<8x128xf32, #tpu.memory_space<vmem>>, vector<8x128xf32>
    tpu.vector_store %arg8[%c0_18, %c0_19], %26 {strides = array<i32>} : memref<8x128xf32, #tpu.memory_space<vmem>>, vector<8x128xf32>,
    return
  }
  func.func @transform_0(%arg0: i32) -> (i32, i32) {
    %c0_i32 = arith.constant 0 : i32
    %c0_i32_0 = arith.constant 0 : i32
    return %arg0, %c0_i32 : i32, i32
  }
  func.func @transform_1(%arg0: i32) -> (i32, i32) {
    %c0_i32 = arith.constant 0 : i32
    %c0_i32_0 = arith.constant 0 : i32
    %c0_i32_1 = arith.constant 0 : i32
    return %c0_i32, %c0_i32_0 : i32, i32
  }
  func.func @transform_2(%arg0: i32) -> (i32, i32) {
    %c0_i32 = arith.constant 0 : i32
    %c0_i32_0 = arith.constant 0 : i32
    %c0_i32_1 = arith.constant 0 : i32
    return %c0_i32, %c0_i32_0 : i32, i32
  }
  func.func @transform_3(%arg0: i32) -> (i32, i32) {
    %c0_i32 = arith.constant 0 : i32
    %c0_i32_0 = arith.constant 0 : i32
    %c0_i32_1 = arith.constant 0 : i32
    return %c0_i32, %c0_i32_0 : i32, i32
  }
  func.func @transform_4(%arg0: i32) -> (i32, i32) {
    %c0_i32 = arith.constant 0 : i32
    %c0_i32_0 = arith.constant 0 : i32
    %c0_i32_1 = arith.constant 0 : i32
    return %c0_i32, %c0_i32_0 : i32, i32
  }
  func.func @transform_5(%arg0: i32) -> (i32, i32) {
    %c0_i32 = arith.constant 0 : i32
    %c0_i32_0 = arith.constant 0 : i32
    %c0_i32_1 = arith.constant 0 : i32
    return %c0_i32, %c0_i32_0 : i32, i32
  }
  func.func @transform_6(%arg0: i32) -> (i32, i32) {
    %c0_i32 = arith.constant 0 : i32
    %c0_i32_0 = arith.constant 0 : i32
    %c0_i32_1 = arith.constant 0 : i32
    return %c0_i32, %c0_i32_0 : i32, i32
  }
  func.func @transform_7(%arg0: i32) -> (i32, i32) {
    %c0_i32 = arith.constant 0 : i32
    %c0_i32_0 = arith.constant 0 : i32
    return %arg0, %c0_i32 : i32, i32
  }
}

</mosaic_0001>

<llo_original>
// kernel: tpu_custom_call.1
$region0: #{tpu_custom_call.1}
  #allocation0 [shape = 'u32[]', space=smem, size = 0x4, offset = 0x4, fixed_abs, tag = 'smem constant byte address 0x4 - core index']
  #allocation1 [shape = 'u32[144,128]{1,0:T(1,128)}', space=vmem, size = 0x12000, scoped, tag = 'internal scratch']
  %s0 = inlined_call_operand.hbm [shape: bf16[8,32], index: 0, kind: input, shape index: {}]
  %s1 = inlined_call_operand.hbm [shape: bf16[32,32], index: 1, kind: input, shape index: {}]
  %s2 = inlined_call_operand.hbm [shape: f32[1,32], index: 2, kind: input, shape index: {}]
  %s3 = inlined_call_operand.hbm [shape: bf16[32,32], index: 3, kind: input, shape index: {}]
  %s4 = inlined_call_operand.hbm [shape: f32[1,32], index: 4, kind: input, shape index: {}]
  %s5 = inlined_call_operand.hbm [shape: bf16[32,128], index: 5, kind: input, shape index: {}]
  %s6 = inlined_call_operand.hbm [shape: f32[1,128], index: 6, kind: input, shape index: {}]
  %s7 = inlined_call_operand.hbm [shape: f32[8,128], index: 7, kind: output, shape index: {}]
  %s8 = sld [smem:[#allocation0]]
  $region66: #{tpu_custom_call.1} parent=0
    _
  %s10 = ssub.s32 1, %s8
  %s11 = scalar_select 0, %s10, %s8
  $region1: #{tpu_custom_call.1} parent=0
    #allocation2 [shape = 'u8[2048]{0}', space=vmem, size = 0x800, scoped, tag = 'input window, operand 0, single buffered']
    #allocation3 [shape = 's32[1]{0}', space=sflag, size = 0x4, scoped, tag = 'scoped memory for tpu_custom_call.1']
    #allocation4 [shape = 's32[1]{0}', space=sflag, size = 0x4, scoped, tag = 'scoped memory for tpu_custom_call.1']
    #allocation5 [shape = 'u8[8192]{0}', space=vmem, size = 0x2000, scoped, tag = 'input window, operand 1, single buffered']
    #allocation6 [shape = 's32[1]{0}', space=sflag, size = 0x4, scoped, tag = 'scoped memory for tpu_custom_call.1']
    #allocation7 [shape = 'u8[512]{0}', space=vmem, size = 0x400, scoped, tag = 'input window, operand 2, single buffered']
    #allocation8 [shape = 'u8[8192]{0}', space=vmem, size = 0x2000, scoped, tag = 'input window, operand 3, single buffered']
    #allocation9 [shape = 's32[1]{0}', space=sflag, size = 0x4, scoped, tag = 'scoped memory for tpu_custom_call.1']
    #allocation10 [shape = 'u8[512]{0}', space=vmem, size = 0x400, scoped, tag = 'input window, operand 4, single buffered']
    #allocation11 [shape = 'u8[8192]{0}', space=vmem, size = 0x2000, scoped, tag = 'input window, operand 5, single buffered']
    #allocation12 [shape = 's32[1]{0}', space=sflag, size = 0x4, scoped, tag = 'scoped memory for tpu_custom_call.1']
    #allocation13 [shape = 'u8[512]{0}', space=vmem, size = 0x400, scoped, tag = 'input window, operand 6, single buffered']
    #allocation14 [shape = 'u8[4096]{0}', space=vmem, size = 0x1000, scoped, tag = 'output window, operand 0, single buffered']
    %12 = vsyncpa [#allocation3], 0
    %13 = vsyncpa [#allocation6], 0
    %14 = vsyncpa [#allocation9], 0
    %15 = vsyncpa [#allocation12], 0
    %16 = vsyncpa [#allocation4], 0
    // Predicated region
    $region2: #{tpu_custom_call.1} parent=1 // pred_check
      _
    $region3: #{tpu_custom_call.1} parent=1 // pred_check_branch
      %18 = sbr.rel (0) target = $region5
    $region4: #{tpu_custom_call.1} parent=1 // pred_region
      %s20 = ssub.s32 64, 64
      %21 = vsyncadd [#allocation3], %s20
      %s23 = sshll.u32 [#allocation2], 4
      %s24 = int_to_ptr.vmem [resolvable:$true] %s23
      %26 = dma.hbm_to_vmem [thread:$0]  %s0, 64, %s24, [#allocation3]
    $region5: #{tpu_custom_call.1} parent=1 // pred_fallthru
      _
    // Predicated region
    $region6: #{tpu_custom_call.1} parent=1 // pred_check
      _
    $region7: #{tpu_custom_call.1} parent=1 // pred_check_branch
      %28 = sbr.rel (0) target = $region9
    $region8: #{tpu_custom_call.1} parent=1 // pred_region
      %s30 = ssub.s32 256, 256
      %31 = vsyncadd [#allocation6], %s30
      %s32 = sshll.u32 [#allocation5], 4
      %s33 = int_to_ptr.vmem [resolvable:$true] %s32
      %38 = dma.hbm_to_vmem [thread:$0]  %s1, 256, %s33, [#allocation6], 64, 64, 4
    $region9: #{tpu_custom_call.1} parent=1 // pred_fallthru
      _
    // Predicated region
    $region10: #{tpu_custom_call.1} parent=1 // pred_check
      _
    $region11: #{tpu_custom_call.1} parent=1 // pred_check_branch
      %40 = sbr.rel (0) target = $region13
    $region12: #{tpu_custom_call.1} parent=1 // pred_region
      %s42 = ssub.s32 16, 16
      %43 = vsyncadd [#allocation6], %s42
      %s45 = sshll.u32 [#allocation7], 4
      %s46 = int_to_ptr.vmem [resolvable:$true] %s45
      %48 = dma.hbm_to_vmem [thread:$0]  %s2, 16, %s46, [#allocation6]
    $region13: #{tpu_custom_call.1} parent=1 // pred_fallthru
      _
    // Predicated region
    $region14: #{tpu_custom_call.1} parent=1 // pred_check
      _
    $region15: #{tpu_custom_call.1} parent=1 // pred_check_branch
      %50 = sbr.rel (0) target = $region17
    $region16: #{tpu_custom_call.1} parent=1 // pred_region
      %s52 = ssub.s32 256, 256
      %53 = vsyncadd [#allocation9], %s52
      %s54 = sshll.u32 [#allocation8], 4
      %s55 = int_to_ptr.vmem [resolvable:$true] %s54
      %60 = dma.hbm_to_vmem [thread:$0]  %s3, 256, %s55, [#allocation9], 64, 64, 4
    $region17: #{tpu_custom_call.1} parent=1 // pred_fallthru
      _
    // Predicated region
    $region18: #{tpu_custom_call.1} parent=1 // pred_check
      _
    $region19: #{tpu_custom_call.1} parent=1 // pred_check_branch
      %62 = sbr.rel (0) target = $region21
    $region20: #{tpu_custom_call.1} parent=1 // pred_region
      %s64 = ssub.s32 16, 16
      %65 = vsyncadd [#allocation9], %s64
      %s67 = sshll.u32 [#allocation10], 4
      %s68 = int_to_ptr.vmem [resolvable:$true] %s67
      %70 = dma.hbm_to_vmem [thread:$0]  %s4, 16, %s68, [#allocation9]
    $region21: #{tpu_custom_call.1} parent=1 // pred_fallthru
      _
    // Predicated region
    $region22: #{tpu_custom_call.1} parent=1 // pred_check
      _
    $region23: #{tpu_custom_call.1} parent=1 // pred_check_branch
      %72 = sbr.rel (0) target = $region25
    $region24: #{tpu_custom_call.1} parent=1 // pred_region
      %s74 = ssub.s32 256, 256
      %75 = vsyncadd [#allocation12], %s74
      %s76 = sshll.u32 [#allocation11], 4
      %s77 = int_to_ptr.vmem [resolvable:$true] %s76
      %82 = dma.hbm_to_vmem [thread:$0]  %s5, 256, %s77, [#allocation12], 64, 64, 4
    $region25: #{tpu_custom_call.1} parent=1 // pred_fallthru
      _
    // Predicated region
    $region26: #{tpu_custom_call.1} parent=1 // pred_check
      _
    $region27: #{tpu_custom_call.1} parent=1 // pred_check_branch
      %84 = sbr.rel (0) target = $region29
    $region28: #{tpu_custom_call.1} parent=1 // pred_region
      %s86 = ssub.s32 16, 16
      %87 = vsyncadd [#allocation12], %s86
      %s89 = sshll.u32 [#allocation13], 4
      %s90 = int_to_ptr.vmem [resolvable:$true] %s89
      %92 = dma.hbm_to_vmem [thread:$0]  %s6, 16, %s90, [#allocation12]
    $region29: #{tpu_custom_call.1} parent=1 // pred_fallthru
      _
    // Predicated region
    $region30: #{tpu_custom_call.1} parent=1 // pred_check
      _
    $region31: #{tpu_custom_call.1} parent=1 // pred_check_branch
      %94 = sbr.rel (0) target = $region33
    $region32: #{tpu_custom_call.1} parent=1 // pred_region
      %95 = dma.done [#allocation3], 64
    $region33: #{tpu_custom_call.1} parent=1 // pred_fallthru
      _
    // Predicated region
    $region34: #{tpu_custom_call.1} parent=1 // pred_check
      _
    $region35: #{tpu_custom_call.1} parent=1 // pred_check_branch
      %97 = sbr.rel (0) target = $region37
    $region36: #{tpu_custom_call.1} parent=1 // pred_region
      %98 = dma.done [#allocation6], 256
    $region37: #{tpu_custom_call.1} parent=1 // pred_fallthru
      _
    // Predicated region
    $region38: #{tpu_custom_call.1} parent=1 // pred_check
      _
    $region39: #{tpu_custom_call.1} parent=1 // pred_check_branch
      %100 = sbr.rel (0) target = $region41
    $region40: #{tpu_custom_call.1} parent=1 // pred_region
      %101 = dma.done [#allocation6], 16
    $region41: #{tpu_custom_call.1} parent=1 // pred_fallthru
      _
    // Predicated region
    $region42: #{tpu_custom_call.1} parent=1 // pred_check
      _
    $region43: #{tpu_custom_call.1} parent=1 // pred_check_branch
      %103 = sbr.rel (0) target = $region45
    $region44: #{tpu_custom_call.1} parent=1 // pred_region
      %104 = dma.done [#allocation9], 256
    $region45: #{tpu_custom_call.1} parent=1 // pred_fallthru
      _
    // Predicated region
    $region46: #{tpu_custom_call.1} parent=1 // pred_check
      _
    $region47: #{tpu_custom_call.1} parent=1 // pred_check_branch
      %106 = sbr.rel (0) target = $region49
    $region48: #{tpu_custom_call.1} parent=1 // pred_region
      %107 = dma.done [#allocation9], 16
    $region49: #{tpu_custom_call.1} parent=1 // pred_fallthru
      _
    // Predicated region
    $region50: #{tpu_custom_call.1} parent=1 // pred_check
      _
    $region51: #{tpu_custom_call.1} parent=1 // pred_check_branch
      %109 = sbr.rel (0) target = $region53
    $region52: #{tpu_custom_call.1} parent=1 // pred_region
      %110 = dma.done [#allocation12], 256
    $region53: #{tpu_custom_call.1} parent=1 // pred_fallthru
      _
    // Predicated region
    $region54: #{tpu_custom_call.1} parent=1 // pred_check
      _
    $region55: #{tpu_custom_call.1} parent=1 // pred_check_branch
      %112 = sbr.rel (0) target = $region57
    $region56: #{tpu_custom_call.1} parent=1 // pred_region
      %113 = dma.done [#allocation12], 16
    $region57: #{tpu_custom_call.1} parent=1 // pred_fallthru
      _
    %v115 = vld [vmem:[#allocation2] sm:$0xf]
    %v116 = vld [vmem:[#allocation5] sm:$0xf]
    %v117 = vld [vmem:[#allocation5 + $0x4] sm:$0xf]
    %v118 = vld [vmem:[#allocation5 + $0x8] sm:$0xf]
    %v119 = vld [vmem:[#allocation5 + $0xc] sm:$0xf]
    %v120 = vld [vmem:[#allocation7] sm:$0x1]
    %v122 = vlaneseq
    %v123 = vshrl.u32 %v122, 7
    %v124 = vsub.s32 0, %v123
    %v125 = vrot.slane %v120, %v124
    %v131 = vunpack.c.l.b16 %v116
    %v132 = vunpack.c.l.b16 %v117
    %v133 = vunpack.c.l.b16 %v118
    %v134 = vunpack.c.l.b16 %v119
    %v135 = vpack.c.b16 %v132, %v131
    %v136 = vpack.c.b16 %v134, %v133
    %vm139 = vcmask 261120
    %v141 = vsel %vm139, %v115, 0
    %143 = vmatprep.subr.bf16.mxu0 0
    %144 = vmatpush1.bf16.msra.mxu0 %v135
    %145 = vmatprep.subr.bf16.mxu0 0
    %146 = vmatpush1.bf16.msra.mxu0 %v136
    %147 = vmatprep.subr.bf16.mxu0 0
    %148 = vmatpush1.bf16.msra.mxu0 0
    %149 = vmatprep.subr.bf16.mxu0 0
    %150 = vmatpush1.bf16.msra.mxu0 0
    %151 = vmatprep.subr.bf16.mxu0 0
    %152 = vmatpush1.bf16.msra.mxu0 0
    %153 = vmatprep.subr.bf16.mxu0 0
    %154 = vmatpush1.bf16.msra.mxu0 0
    %155 = vmatprep.subr.bf16.mxu0 0
    %156 = vmatpush1.bf16.msra.mxu0 0
    %157 = vmatprep.subr.bf16.mxu0 0
    %158 = vmatpush1.bf16.msra.mxu0 0
    %159 = vmatprep.subr.bf16.mxu0 0
    %160 = vmatpush1.bf16.msra.mxu0 0
    %161 = vmatprep.subr.bf16.mxu0 0
    %162 = vmatpush1.bf16.msra.mxu0 0
    %163 = vmatprep.subr.bf16.mxu0 0
    %164 = vmatpush1.bf16.msra.mxu0 0
    %165 = vmatprep.subr.bf16.mxu0 0
    %166 = vmatpush1.bf16.msra.mxu0 0
    %167 = vmatprep.subr.bf16.mxu0 0
    %168 = vmatpush1.bf16.msra.mxu0 0
    %169 = vmatprep.subr.bf16.mxu0 0
    %170 = vmatpush1.bf16.msra.mxu0 0
    %171 = vmatprep.subr.bf16.mxu0 0
    %172 = vmatpush1.bf16.msra.mxu0 0
    %173 = vmatprep.subr.bf16.mxu0 0
    %174 = vmatpush1.bf16.msra.mxu0 0
    %175 = vmatprep.mubr.bf16.mxu0 0
    %176 = vmatmul.mubr.bf16.gmra.mrb[0].mxu0 %v141
    %v177 = vpop.f32.mrb[0].mxu0
    %v178 = vadd.f32 %v125, %v177
    %v179 = vpop.f32.mrb[0].mxu0
    %v180 = vpop.f32.mrb[0].mxu0
    %v181 = vpop.f32.mrb[0].mxu0
    %182 = vdwg.mxu0
    %v183 = vmax.f32 %v178, 0.0
    %v184 = vld [vmem:[#allocation8] sm:$0xf]
    %v185 = vld [vmem:[#allocation8 + $0x4] sm:$0xf]
    %v186 = vld [vmem:[#allocation8 + $0x8] sm:$0xf]
    %v187 = vld [vmem:[#allocation8 + $0xc] sm:$0xf]
    %v188 = vld [vmem:[#allocation10] sm:$0x1]
    %v189 = vpack.c.bf16 %v183, %v183
    %v191 = vlaneseq
    %v192 = vshrl.u32 %v191, 7
    %v193 = vsub.s32 0, %v192
    %v194 = vrot.slane %v188, %v193
    %v200 = vunpack.c.l.b16 %v184
    %v201 = vunpack.c.l.b16 %v185
    %v202 = vunpack.c.l.b16 %v186
    %v203 = vunpack.c.l.b16 %v187
    %v204 = vpack.c.b16 %v201, %v200
    %v205 = vpack.c.b16 %v203, %v202
    %v209 = vsel %vm139, %v189, 0
    %211 = vmatprep.subr.bf16.mxu0 0
    %212 = vmatpush1.bf16.msra.mxu0 %v204
    %213 = vmatprep.subr.bf16.mxu0 0
    %214 = vmatpush1.bf16.msra.mxu0 %v205
    %215 = vmatprep.subr.bf16.mxu0 0
    %216 = vmatpush1.bf16.msra.mxu0 0
    %217 = vmatprep.subr.bf16.mxu0 0
    %218 = vmatpush1.bf16.msra.mxu0 0
    %219 = vmatprep.subr.bf16.mxu0 0
    %220 = vmatpush1.bf16.msra.mxu0 0
    %221 = vmatprep.subr.bf16.mxu0 0
    %222 = vmatpush1.bf16.msra.mxu0 0
    %223 = vmatprep.subr.bf16.mxu0 0
    %224 = vmatpush1.bf16.msra.mxu0 0
    %225 = vmatprep.subr.bf16.mxu0 0
    %226 = vmatpush1.bf16.msra.mxu0 0
    %227 = vmatprep.subr.bf16.mxu0 0
    %228 = vmatpush1.bf16.msra.mxu0 0
    %229 = vmatprep.subr.bf16.mxu0 0
    %230 = vmatpush1.bf16.msra.mxu0 0
    %231 = vmatprep.subr.bf16.mxu0 0
    %232 = vmatpush1.bf16.msra.mxu0 0
    %233 = vmatprep.subr.bf16.mxu0 0
    %234 = vmatpush1.bf16.msra.mxu0 0
    %235 = vmatprep.subr.bf16.mxu0 0
    %236 = vmatpush1.bf16.msra.mxu0 0
    %237 = vmatprep.subr.bf16.mxu0 0
    %238 = vmatpush1.bf16.msra.mxu0 0
    %239 = vmatprep.subr.bf16.mxu0 0
    %240 = vmatpush1.bf16.msra.mxu0 0
    %241 = vmatprep.subr.bf16.mxu0 0
    %242 = vmatpush1.bf16.msra.mxu0 0
    %243 = vmatprep.mubr.bf16.mxu0 0
    %244 = vmatmul.mubr.bf16.gmra.mrb[0].mxu0 %v209
    %v245 = vpop.f32.mrb[0].mxu0
    %v246 = vadd.f32 %v194, %v245
    %v247 = vpop.f32.mrb[0].mxu0
    %v248 = vpop.f32.mrb[0].mxu0
    %v249 = vpop.f32.mrb[0].mxu0
    %250 = vdwg.mxu0
    %v251 = vmax.f32 %v246, 0.0
    %v252 = vld [vmem:[#allocation11] sm:$0xf]
    %v253 = vld [vmem:[#allocation11 + $0x4] sm:$0xf]
    %v254 = vld [vmem:[#allocation11 + $0x8] sm:$0xf]
    %v255 = vld [vmem:[#allocation11 + $0xc] sm:$0xf]
    %v256 = vpack.c.bf16 %v251, %v251
    %v257 = vld [vmem:[#allocation13] sm:$0x1]
    %v259 = vlaneseq
    %v260 = vshrl.u32 %v259, 7
    %v261 = vsub.s32 0, %v260
    %v262 = vrot.slane %v257, %v261
    %v268 = vunpack.c.l.b16 %v252
    %v269 = vunpack.c.l.b16 %v253
    %v270 = vunpack.c.l.b16 %v254
    %v271 = vunpack.c.l.b16 %v255
    %v272 = vpack.c.b16 %v269, %v268
    %v273 = vpack.c.b16 %v271, %v270
    %v277 = vsel %vm139, %v256, 0
    %279 = vmatprep.subr.bf16.mxu0 0
    %280 = vmatpush1.bf16.msra.mxu0 %v272
    %281 = vmatprep.subr.bf16.mxu0 0
    %282 = vmatpush1.bf16.msra.mxu0 %v273
    %283 = vmatprep.subr.bf16.mxu0 0
    %284 = vmatpush1.bf16.msra.mxu0 0
    %285 = vmatprep.subr.bf16.mxu0 0
    %286 = vmatpush1.bf16.msra.mxu0 0
    %287 = vmatprep.subr.bf16.mxu0 0
    %288 = vmatpush1.bf16.msra.mxu0 0
    %289 = vmatprep.subr.bf16.mxu0 0
    %290 = vmatpush1.bf16.msra.mxu0 0
    %291 = vmatprep.subr.bf16.mxu0 0
    %292 = vmatpush1.bf16.msra.mxu0 0
    %293 = vmatprep.subr.bf16.mxu0 0
    %294 = vmatpush1.bf16.msra.mxu0 0
    %295 = vmatprep.subr.bf16.mxu0 0
    %296 = vmatpush1.bf16.msra.mxu0 0
    %297 = vmatprep.subr.bf16.mxu0 0
    %298 = vmatpush1.bf16.msra.mxu0 0
    %299 = vmatprep.subr.bf16.mxu0 0
    %300 = vmatpush1.bf16.msra.mxu0 0
    %301 = vmatprep.subr.bf16.mxu0 0
    %302 = vmatpush1.bf16.msra.mxu0 0
    %303 = vmatprep.subr.bf16.mxu0 0
    %304 = vmatpush1.bf16.msra.mxu0 0
    %305 = vmatprep.subr.bf16.mxu0 0
    %306 = vmatpush1.bf16.msra.mxu0 0
    %307 = vmatprep.subr.bf16.mxu0 0
    %308 = vmatpush1.bf16.msra.mxu0 0
    %309 = vmatprep.subr.bf16.mxu0 0
    %310 = vmatpush1.bf16.msra.mxu0 0
    %311 = vmatprep.mubr.bf16.mxu0 0
    %312 = vmatmul.mubr.bf16.gmra.mrb[0].mxu0 %v277
    %v313 = vpop.f32.mrb[0].mxu0
    %v314 = vadd.f32 %v262, %v313
    %v315 = vpop.f32.mrb[0].mxu0
    %v316 = vpop.f32.mrb[0].mxu0
    %v317 = vpop.f32.mrb[0].mxu0
    %318 = vdwg.mxu0
    %v319 = vxor.u32 %v314, 2147483648
    %v320 = vmul.f32 %v319, 1.442695
    %v321 = vpow.pop %v320
    %v322 = vadd.f32 %v321, 1.0
    %v323 = vrcp.pop %v322
    %v324 = vmul.f32 1.0, %v323
    %325 = vst [vmem:[#allocation14] sm:$0xff] %v324
    // Predicated region
    $region58: #{tpu_custom_call.1} parent=1 // pred_check
      _
    $region59: #{tpu_custom_call.1} parent=1 // pred_check_branch
      %327 = sbr.rel (0) target = $region61
    $region60: #{tpu_custom_call.1} parent=1 // pred_region
      %s329 = ssub.s32 128, 128
      %330 = vsyncadd [#allocation4], %s329
      %s332 = sshll.u32 [#allocation14], 4
      %s333 = int_to_ptr.vmem [resolvable:$true] %s332
      %335 = dma.vmem_to_hbm [thread:$0]  %s333, 128, %s7, [#allocation4]
    $region61: #{tpu_custom_call.1} parent=1 // pred_fallthru
      _
    // Predicated region
    $region62: #{tpu_custom_call.1} parent=1 // pred_check
      _
    $region63: #{tpu_custom_call.1} parent=1 // pred_check_branch
      %337 = sbr.rel (0) target = $region65
    $region64: #{tpu_custom_call.1} parent=1 // pred_region
      %338 = dma.done [#allocation4], 128
    $region65: #{tpu_custom_call.1} parent=1 // pred_fallthru
      _
    %339 = vsyncpa [#allocation3], 1
    %340 = vsyncpa [#allocation6], 1
    %341 = vsyncpa [#allocation9], 1
    %342 = vsyncpa [#allocation12], 1
    %343 = vsyncpa [#allocation4], 1

</llo_original>
